<compile_context>
chip_gen: v7x
topology: tpu7x:2x2x1
jax: 0.10.0
libtpu: 0.0.40
codegen_flags: <defaults>
</compile_context>

<pallas_src>
import functools
import math

import jax
import jax.numpy as jnp
from jax import lax
from jax.experimental import pallas as pl
from jax.experimental.pallas import tpu as pltpu


def _round_up(x, m):
    return (x + m - 1) // m * m


_VMEM_LIMIT = 64 * 1024 * 1024   # <= v7x physical VMEM; generous headroom on v5e/v6e
_MAX_FALLBACK_SPAN = 64          # masked-select skew fallback only allowed for tiny spans


# ----------------------------------------------------------------------------- #
# Skew helpers (reproduce the PyTorch _skew of the relative-position scores)
# ----------------------------------------------------------------------------- #
def _skew_rows_select(pos_w, attn_span, rel):
    """Fallback skew: scatter pos_w[:, l] onto diagonal rel == l.
    O(attn_span) masked selects -> only allowed for small attn_span."""
    out = jnp.zeros_like(pos_w)
    for l in range(attn_span):
        out = out + jnp.where(rel == l, pos_w[:, l:l + 1], 0.0)
    return out


def _probe_roll_kernel(x_ref, o_ref, *, stride):
    o_ref[...] = pltpu.roll(x_ref[...], 0, 1, stride=stride, stride_axis=0)


_ROLL_STRIDE = ("unset",)


def _get_roll_stride():
    """Probe once per process (fixed (8,128) shape, outside the forward path) which
    pltpu.roll stride convention realises 'rotate row m right by m'.  Returns None if
    the strided rotate is unavailable on this backend."""
    global _ROLL_STRIDE
    if _ROLL_STRIDE != ("unset",):
        return _ROLL_STRIDE[0]
    rows, cols = 8, 128
    x = jnp.arange(rows * cols, dtype=jnp.float32).reshape(rows, cols)
    expected = jnp.stack([jnp.roll(x[m], m) for m in range(rows)])
    found = None
    for stride in (1, -1):
        try:
            y = pl.pallas_call(
                functools.partial(_probe_roll_kernel, stride=stride),
                out_shape=jax.ShapeDtypeStruct((rows, cols), jnp.float32))(x)
            if bool(jnp.array_equal(jax.block_until_ready(y), expected)):
                found = stride
                break
        except Exception:
            continue
    _ROLL_STRIDE = (found,)
    return found


# ----------------------------------------------------------------------------- #
# Tiled linear kernel: x @ w_t with f32 VMEM accumulator, bf16 MXU operands
# ----------------------------------------------------------------------------- #
def _linear_kernel(x_ref, w_ref, o_ref, acc_ref):
    @pl.when(pl.program_id(2) == 0)
    def _():
        acc_ref[...] = jnp.zeros_like(acc_ref)

    acc_ref[...] += jnp.dot(x_ref[...], w_ref[...],
                            preferred_element_type=jnp.float32)

    @pl.when(pl.program_id(2) == pl.num_programs(2) - 1)
    def _():
        o_ref[...] = acc_ref[...].astype(o_ref.dtype)


def _pick_tile(n, target):
    if n <= target:
        return n
    if n % target == 0:
        return target
    return n  # awkward size: full block (always layout-legal)


def linear_pallas(x, w_t, *, out_dtype=jnp.float32):
    """x: (R, IN) @ w_t: (IN, OUT) -> (R, OUT).  Operands are cast to bf16 HERE (outside
    the kernel) so each tile is cast once, not once per grid revisit; f32 accumulation."""
    x = x.astype(jnp.bfloat16)
    w_t = w_t.astype(jnp.bfloat16)
    R, K = x.shape
    K2, N = w_t.shape
    assert K == K2
    tr = _pick_tile(R, 512)
    tn = _pick_tile(N, 1024)
    tk = _pick_tile(K, 512)
    grid = (R // tr, N // tn, K // tk)
    return pl.pallas_call(
        _linear_kernel,
        out_shape=jax.ShapeDtypeStruct((R, N), out_dtype),
        grid=grid,
        in_specs=[pl.BlockSpec((tr, tk), lambda i, j, k: (i, k)),
                  pl.BlockSpec((tk, tn), lambda i, j, k: (k, j))],
        out_specs=pl.BlockSpec((tr, tn), lambda i, j, k: (i, j)),
        scratch_shapes=[pltpu.VMEM((tr, tn), jnp.float32)],
        compiler_params=pltpu.CompilerParams(
            dimension_semantics=("parallel", "parallel", "arbitrary"),
            vmem_limit_bytes=_VMEM_LIMIT),
    )(x, w_t)


# ----------------------------------------------------------------------------- #
# Banded sequential attention kernel: grid = (batch, query tile), all heads packed,
# manual double-buffered K/V window DMA.
# ----------------------------------------------------------------------------- #
def _mhsa_attn_kernel(q_ref, pe_ref, k_hbm, v_hbm, o_ref, k_buf, v_buf, sem, *,
                      nb_heads, head_dim, attn_span, q_tile, window, roll_stride):
    b = pl.program_id(0)
    i = pl.program_id(1)
    nq = pl.num_programs(1)
    slot = i & 1

    def start_fetch(step, s):
        pltpu.make_async_copy(k_hbm.at[b, pl.ds(step * q_tile, window), :],
                              k_buf.at[s], sem.at[0, s]).start()
        pltpu.make_async_copy(v_hbm.at[b, pl.ds(step * q_tile, window), :],
                              v_buf.at[s], sem.at[1, s]).start()

    # Prime the first window of every batch row (correct regardless of how the batch axis
    # is sharded across cores); otherwise the current window was prefetched last step.
    @pl.when(i == 0)
    def _():
        start_fetch(0, 0)

    # P4: prefetch the NEXT query tile's K/V window while this one is computed.
    @pl.when(i + 1 < nq)
    def _():
        start_fetch(i + 1, (i + 1) & 1)

    # Wait only on this step's slot (descriptor shape matches the in-flight copy).
    pltpu.make_async_copy(k_hbm.at[b, pl.ds(i * q_tile, window), :],
                          k_buf.at[slot], sem.at[0, slot]).wait()
    pltpu.make_async_copy(v_hbm.at[b, pl.ds(i * q_tile, window), :],
                          v_buf.at[slot], sem.at[1, slot]).wait()

    kb = k_buf.at[slot]                              # (W, H) bf16 view
    vb = v_buf.at[slot]
    pe = pe_ref[...]                                 # (D, W) bf16; cols >= attn_span are 0

    row = lax.broadcasted_iota(jnp.int32, (q_tile, window), 0)
    col = lax.broadcasted_iota(jnp.int32, (q_tile, window), 1)
    rel = col - row                                  # key offset relative to the query row
    band = (rel >= 0) & (rel < attn_span)
    inv_scale = 1.0 / math.sqrt(head_dim)

    parts = []
    for h in range(nb_heads):
        sl = slice(h * head_dim, (h + 1) * head_dim)
        # fold 1/sqrt(D) into q once (content + positional terms are both linear in q)
        qh = (q_ref[0, :, sl] * inv_scale).astype(jnp.bfloat16)            # (tq, D)

        # relative-position scores, skewed so pos[m, m + l] = q_h[m] . key_pe[:, l]
        pos = jnp.dot(qh, pe, preferred_element_type=jnp.float32)          # (tq, W)
        if roll_stride is not None:
            # single XLU layout op: rotate row m right by m; wrapped entries land outside
            # the band (W >= q_tile + attn_span) and pe columns >= attn_span are zero.
            pos = pltpu.roll(pos, 0, 1, stride=roll_stride, stride_axis=0)
        else:
            pos = _skew_rows_select(pos, attn_span, rel)

        kh = kb[:, sl]                                                     # (W, D) bf16
        scores = lax.dot_general(qh, kh, (((1,), (1,)), ((), ())),
                                 preferred_element_type=jnp.float32)       # (tq, W)
        logits = jnp.where(band, scores + pos, -1e30)
        logits = logits - jnp.max(logits, axis=-1, keepdims=True)
        p = jnp.exp(logits)
        denom = jnp.sum(p, axis=-1, keepdims=True)
        attn = p * pl.reciprocal(denom, approx=True)

        parts.append(jnp.dot(attn.astype(jnp.bfloat16), vb[:, sl],
                             preferred_element_type=jnp.float32))          # (tq, D)

    # single lane-dense (tq, H) store instead of nb_heads width-D masked partial stores
    o_ref[0] = jnp.concatenate(parts, axis=-1).astype(o_ref.dtype)


def attention_pallas(q, pe_pad, k_pad, v_pad, *, nb_heads, head_dim, attn_span,
                     q_tile, window, roll_stride):
    B, M_pad, H = q.shape
    nq = M_pad // q_tile
    kernel = functools.partial(
        _mhsa_attn_kernel, nb_heads=nb_heads, head_dim=head_dim, attn_span=attn_span,
        q_tile=q_tile, window=window, roll_stride=roll_stride)
    return pl.pallas_call(
        kernel,
        out_shape=jax.ShapeDtypeStruct((B, M_pad, H), jnp.bfloat16),
        grid=(B, nq),
        in_specs=[
            pl.BlockSpec((1, q_tile, H), lambda b, i: (b, i, 0)),   # packed-head queries
            pl.BlockSpec((pe_pad.shape[0], window), lambda b, i: (0, 0)),  # resident pe
            pl.BlockSpec(memory_space=pl.ANY),                      # K stays in HBM
            pl.BlockSpec(memory_space=pl.ANY),                      # V stays in HBM
        ],
        out_specs=pl.BlockSpec((1, q_tile, H), lambda b, i: (b, i, 0)),
        scratch_shapes=[
            pltpu.VMEM((2, window, H), jnp.bfloat16),               # double-buffered K window
            pltpu.VMEM((2, window, H), jnp.bfloat16),               # double-buffered V window
            pltpu.SemaphoreType.DMA((2, 2)),                        # [k/v, slot]
        ],
        compiler_params=pltpu.CompilerParams(
            # query-tile axis carries the K/V prefetch -> sequential per core ("arbitrary");
            # batch axis can be sharded across TensorCores (v7x).
            dimension_semantics=("parallel", "arbitrary"),
            vmem_limit_bytes=_VMEM_LIMIT),
    )(q, pe_pad, k_pad, v_pad)


# ----------------------------------------------------------------------------- #
# MultiHeadSeqAttention forward (Pallas kernels + cheap glue)
# ----------------------------------------------------------------------------- #
def multi_head_seq_attention(query, key, value, key_pe, params_t, *, nb_heads, attn_span):
    """query: (B, M, H); key/value: (B, M + attn_span, H); key_pe: (1, H//nb_heads, A).
    params_t holds the projection weights already transposed to (IN, OUT), stored bf16."""
    # TODO(synk): adaptive-span masking, persistent memory and output_attentions are not
    #             implemented (adapt_span_enabled=False inference path); dropout = identity.
    B, M, H = query.shape
    S = key.shape[1]
    D = H // nb_heads
    assert S == M + attn_span, "key/value must carry attn_span cached steps"

    q = linear_pallas(query.reshape(B * M, H), params_t["wq_t"],
                      out_dtype=jnp.float32).reshape(B, M, H)
    k = linear_pallas(key.reshape(B * S, H), params_t["wk_t"],
                      out_dtype=jnp.bfloat16).reshape(B, S, H)   # bf16 window feed
    v = linear_pallas(value.reshape(B * S, H), params_t["wv_t"],
                      out_dtype=jnp.bfloat16).reshape(B, S, H)

    # query tiling (pad M to a multiple of the tile; no more tq=M fallback that could
    # blow past v7x's 64 MiB VMEM) + sliding key/value window (banded attention).
    if M <= 256:
        tq, M_pad = M, M
    else:
        tq = 256
        M_pad = _round_up(M, tq)
    if M_pad > M:
        q = jnp.pad(q, ((0, 0), (0, M_pad - M), (0, 0)))
    nq = M_pad // tq
    W = _round_up(tq + attn_span, 128)           # lane-dense score / window width
    # wrapped entries of the strided roll must land outside the band:
    assert W >= tq + attn_span
    S_pad = (nq - 1) * tq + W
    if S_pad > S:                                # pad rows are always outside the band
        pad = S_pad - S
        k = jnp.pad(k, ((0, 0), (0, pad), (0, 0)))
        v = jnp.pad(v, ((0, 0), (0, pad), (0, 0)))

    pe = key_pe.reshape(D, attn_span)
    pe_pad = jnp.pad(pe, ((0, 0), (0, W - attn_span))).astype(jnp.bfloat16)

    roll_stride = _get_roll_stride()             # probed once per process, not per call
    if roll_stride is None and attn_span > _MAX_FALLBACK_SPAN:
        raise NotImplementedError(
            "strided pltpu.roll unavailable on this backend; the masked-select skew "
            f"fallback is only allowed for attn_span <= {_MAX_FALLBACK_SPAN}")

    o = attention_pallas(q, pe_pad, k, v, nb_heads=nb_heads, head_dim=D,
                         attn_span=attn_span, q_tile=tq, window=W,
                         roll_stride=roll_stride)
    o = o[:, :M, :]
    out = linear_pallas(o.reshape(B * M, H), params_t["wo_t"],
                        out_dtype=jnp.float32).reshape(B, M, H)
    return out


# ----------------------------------------------------------------------------- #
# Pure-JAX f32 reference mirroring the PyTorch module (incl. _skew/_unskew band)
# ----------------------------------------------------------------------------- #
def reference_forward(query, key, value, key_pe, params, *, nb_heads, attn_span):
    B, M, H = query.shape
    S = key.shape[1]
    D = H // nb_heads
    q = query.reshape(B * M, H) @ params["wq"].T
    k = key.reshape(B * S, H) @ params["wk"].T
    v = value.reshape(B * S, H) @ params["wv"].T

    def split(x, L):
        return x.reshape(B, L, nb_heads, D).transpose(0, 2, 1, 3).reshape(B * nb_heads, L, D)

    qh, kh, vh = split(q, M), split(k, S), split(v, S)
    scores = jnp.einsum("bmd,bsd->bms", qh, kh)              # (BK, M, S)
    ridx = jnp.arange(M)[:, None]
    idx = ridx + jnp.arange(attn_span)[None, :]              # (M, A): key index m + l
    cont = scores[:, ridx, idx]                              # _unskew
    pos = jnp.einsum("bmd,dl->bml", qh, key_pe.reshape(D, attn_span))
    attn = jax.nn.softmax((cont + pos) / math.sqrt(D), axis=-1)
    v_rel = vh[:, idx, :]                                    # (BK, M, A, D)
    oh = jnp.einsum("bml,bmld->bmd", attn, v_rel)            # _skew(attn) @ value
    o = oh.reshape(B, nb_heads, M, D).transpose(0, 2, 1, 3).reshape(B * M, H)
    return (o @ params["wo"].T).reshape(B, M, H)


# ----------------------------------------------------------------------------- #
if __name__ == "__main__":
    B, M, H = 2, 8, 32
    nb_heads = 4
    attn_span = 8
    D = H // nb_heads
    S = M + attn_span

    root = jax.random.PRNGKey(0)
    ks = jax.random.split(root, 8)

    def init(k, shape, scale=0.1):
        return jax.random.normal(k, shape, jnp.float32) * scale

    # torch-layout (OUT, IN) weights of the four bias-free projections
    params = {
        "wq": init(ks[0], (H, H)),
        "wk": init(ks[1], (H, H)),
        "wv": init(ks[2], (H, H)),
        "wo": init(ks[3], (H, H)),
    }
    # transpose + cast to bf16 ONCE at parameter-load time (not per forward call)
    params_t = {name + "_t": w.T.astype(jnp.bfloat16) for name, w in params.items()}

    query = jax.random.normal(ks[4], (B, M, H), jnp.float32)
    key_in = jax.random.normal(ks[5], (B, S, H), jnp.float32)
    value_in = jax.random.normal(ks[6], (B, S, H), jnp.float32)
    key_pe = jax.random.normal(ks[7], (1, D, attn_span), jnp.float32)  # torch.randn(1, D, A)

    out = multi_head_seq_attention(query, key_in, value_in, key_pe, params_t,
                                   nb_heads=nb_heads, attn_span=attn_span)
    out = jax.block_until_ready(out)

    ref = jax.block_until_ready(
        reference_forward(query, key_in, value_in, key_pe, params,
                          nb_heads=nb_heads, attn_span=attn_span))

    assert out.shape == (B, M, H), out.shape
    max_err = float(jnp.max(jnp.abs(out - ref)))
    # bf16 MXU operands / bf16 K,V,pe,o intermediates (f32 accumulation) vs the f32 reference
    assert max_err < 5e-2, f"mismatch vs reference: {max_err}"
    print("KERNEL_OK")
</pallas_src>

<mosaic_0001>
module attributes {stable_mosaic.version = 11 : i64} {
  func.func @_linear_kernel(%arg0: i32, %arg1: i32, %arg2: i32, %arg3: memref<16x32xbf16, #tpu.memory_space<vmem>>, %arg4: memref<32x32xbf16, #tpu.memory_space<vmem>>, %arg5: memref<16x32xf32, #tpu.memory_space<vmem>>, %arg6: memref<16x32xf32, #tpu.memory_space<vmem>>) attributes {dimension_semantics = [#tpu.dimension_semantics<parallel>, #tpu.dimension_semantics<parallel>, #tpu.dimension_semantics<arbitrary>], iteration_bounds = array<i64: 1, 1, 1>, scalar_prefetch = 0 : i64, scratch_operands = 1 : i64, tpu.core_type = #tpu.core_type<tc>, window_params = [{transform_indices = @transform_0, window_bounds = array<i64: 16, 32>}, {transform_indices = @transform_1, window_bounds = array<i64: 32, 32>}, {transform_indices = @transform_2, window_bounds = array<i64: 16, 32>}]} {
    %c0_i32 = arith.constant 0 : i32
    %0 = arith.cmpi eq, %arg2, %c0_i32 : i32
    %1 = arith.extui %0 : i1 to i32
    %c0_i32_0 = arith.constant 0 : i32
    %2 = arith.cmpi ne, %1, %c0_i32_0 : i32
    scf.if %2 {
      %cst_10 = arith.constant 0.000000e+00 : f32
      %12 = vector.broadcast %cst_10 : f32 to vector<16x32xf32>
      %c0_11 = arith.constant 0 : index
      %c0_12 = arith.constant 0 : index
      %13 = vector.load %arg6[%c0_11, %c0_12] : memref<16x32xf32, #tpu.memory_space<vmem>>, vector<16x32xf32>
      tpu.vector_store %arg6[%c0_11, %c0_12], %12 {strides = array<i32>} : memref<16x32xf32, #tpu.memory_space<vmem>>, vector<16x32xf32>,
    } else {
    }
    %c0 = arith.constant 0 : index
    %c0_1 = arith.constant 0 : index
    %3 = vector.load %arg6[%c0, %c0_1] : memref<16x32xf32, #tpu.memory_space<vmem>>, vector<16x32xf32>
    %c0_2 = arith.constant 0 : index
    %c0_3 = arith.constant 0 : index
    %4 = vector.load %arg3[%c0_2, %c0_3] : memref<16x32xbf16, #tpu.memory_space<vmem>>, vector<16x32xbf16>
    %c0_4 = arith.constant 0 : index
    %c0_5 = arith.constant 0 : index
    %5 = vector.load %arg4[%c0_4, %c0_5] : memref<32x32xbf16, #tpu.memory_space<vmem>>, vector<32x32xbf16>
    %cst = arith.constant dense<0.000000e+00> : vector<16x32xf32>
    %6 = tpu.matmul %4, %5, %cst {dimension_numbers = #tpu.dot_dimension_numbers<[1], [0], [0], [1], [0, 0, 1, 1], [], []>} : vector<16x32xbf16>, vector<32x32xbf16>, vector<16x32xf32> -> vector<16x32xf32>
    %7 = arith.addf %3, %6 : vector<16x32xf32>
    %c0_6 = arith.constant 0 : index
    %c0_7 = arith.constant 0 : index
    %8 = vector.load %arg6[%c0_6, %c0_7] : memref<16x32xf32, #tpu.memory_space<vmem>>, vector<16x32xf32>
    tpu.vector_store %arg6[%c0_6, %c0_7], %7 {strides = array<i32>} : memref<16x32xf32, #tpu.memory_space<vmem>>, vector<16x32xf32>,
    %c0_i32_8 = arith.constant 0 : i32
    %9 = arith.cmpi eq, %arg2, %c0_i32_8 : i32
    %10 = arith.extui %9 : i1 to i32
    %c0_i32_9 = arith.constant 0 : i32
    %11 = arith.cmpi ne, %10, %c0_i32_9 : i32
    scf.if %11 {
      %c0_10 = arith.constant 0 : index
      %c0_11 = arith.constant 0 : index
      %12 = vector.load %arg6[%c0_10, %c0_11] : memref<16x32xf32, #tpu.memory_space<vmem>>, vector<16x32xf32>
      %c0_12 = arith.constant 0 : index
      %c0_13 = arith.constant 0 : index
      %13 = vector.load %arg5[%c0_12, %c0_13] : memref<16x32xf32, #tpu.memory_space<vmem>>, vector<16x32xf32>
      tpu.vector_store %arg5[%c0_12, %c0_13], %12 {strides = array<i32>} : memref<16x32xf32, #tpu.memory_space<vmem>>, vector<16x32xf32>,
    } else {
    }
    return
  }
  func.func @transform_0(%arg0: i32, %arg1: i32, %arg2: i32) -> (i32, i32) {
    %c0_i32 = arith.constant 0 : i32
    return %arg0, %arg2 : i32, i32
  }
  func.func @transform_1(%arg0: i32, %arg1: i32, %arg2: i32) -> (i32, i32) {
    %c0_i32 = arith.constant 0 : i32
    return %arg2, %arg1 : i32, i32
  }
  func.func @transform_2(%arg0: i32, %arg1: i32, %arg2: i32) -> (i32, i32) {
    %c0_i32 = arith.constant 0 : i32
    return %arg0, %arg1 : i32, i32
  }
}

</mosaic_0001>

<llo_original>
// kernel: tpu_custom_call.1
$region0: #{tpu_custom_call.1}
  #allocation0 [shape = 'u32[]', space=smem, size = 0x4, offset = 0x4, fixed_abs, tag = 'smem constant byte address 0x4 - core index']
  #allocation1 [shape = 'u32[144,128]{1,0:T(1,128)}', space=vmem, size = 0x12000, scoped, tag = 'internal scratch']
  #allocation2 [shape = 'f32[16,32]{1,0:T(8,128)}', space=vmem, size = 0x2000, scoped, tag = 'scratch operand']
  %s0 = inlined_call_operand.hbm [shape: bf16[16,32], index: 0, kind: input, shape index: {}]
  %s1 = inlined_call_operand.hbm [shape: bf16[32,32], index: 1, kind: input, shape index: {}]
  %s2 = inlined_call_operand.hbm [shape: f32[16,32], index: 2, kind: output, shape index: {}]
  %s3 = sld [smem:[#allocation0]]
  $region34: #{tpu_custom_call.1} parent=0
    _
  %s5 = ssub.s32 1, %s3
  %s6 = scalar_select 0, %s5, %s3
  $region1: #{tpu_custom_call.1} parent=0
    #allocation3 [shape = 'u8[4096]{0}', space=vmem, size = 0x1000, scoped, tag = 'input window, operand 0, single buffered']
    #allocation4 [shape = 's32[1]{0}', space=sflag, size = 0x4, scoped, tag = 'scoped memory for tpu_custom_call.1']
    #allocation5 [shape = 's32[1]{0}', space=sflag, size = 0x4, scoped, tag = 'scoped memory for tpu_custom_call.1']
    #allocation6 [shape = 'u8[8192]{0}', space=vmem, size = 0x2000, scoped, tag = 'input window, operand 1, single buffered']
    #allocation7 [shape = 's32[1]{0}', space=sflag, size = 0x4, scoped, tag = 'scoped memory for tpu_custom_call.1']
    #allocation8 [shape = 'u8[8192]{0}', space=vmem, size = 0x2000, scoped, tag = 'output window, operand 0, single buffered']
    %7 = vsyncpa [#allocation4], 0
    %8 = vsyncpa [#allocation7], 0
    %9 = vsyncpa [#allocation5], 0
    // Predicated region
    $region2: #{tpu_custom_call.1} parent=1 // pred_check
      _
    $region3: #{tpu_custom_call.1} parent=1 // pred_check_branch
      %11 = sbr.rel (0) target = $region5
    $region4: #{tpu_custom_call.1} parent=1 // pred_region
      %s13 = ssub.s32 128, 128
      %14 = vsyncadd [#allocation4], %s13
      %s15 = sshll.u32 [#allocation3], 4
      %s16 = int_to_ptr.vmem [resolvable:$true] %s15
      %21 = dma.hbm_to_vmem [thread:$0]  %s0, 128, %s16, [#allocation4], 64, 64, 4
    $region5: #{tpu_custom_call.1} parent=1 // pred_fallthru
      _
    // Predicated region
    $region6: #{tpu_custom_call.1} parent=1 // pred_check
      _
    $region7: #{tpu_custom_call.1} parent=1 // pred_check_branch
      %23 = sbr.rel (0) target = $region9
    $region8: #{tpu_custom_call.1} parent=1 // pred_region
      %s25 = ssub.s32 256, 256
      %26 = vsyncadd [#allocation7], %s25
      %s27 = sshll.u32 [#allocation6], 4
      %s28 = int_to_ptr.vmem [resolvable:$true] %s27
      %33 = dma.hbm_to_vmem [thread:$0]  %s1, 256, %s28, [#allocation7], 64, 64, 4
    $region9: #{tpu_custom_call.1} parent=1 // pred_fallthru
      _
    // Predicated region
    $region10: #{tpu_custom_call.1} parent=1 // pred_check
      _
    $region11: #{tpu_custom_call.1} parent=1 // pred_check_branch
      %35 = sbr.rel (0) target = $region13
    $region12: #{tpu_custom_call.1} parent=1 // pred_region
      %36 = dma.done [#allocation4], 128
    $region13: #{tpu_custom_call.1} parent=1 // pred_fallthru
      _
    // Predicated region
    $region14: #{tpu_custom_call.1} parent=1 // pred_check
      _
    $region15: #{tpu_custom_call.1} parent=1 // pred_check_branch
      %38 = sbr.rel (0) target = $region17
    $region16: #{tpu_custom_call.1} parent=1 // pred_region
      %39 = dma.done [#allocation7], 256
    $region17: #{tpu_custom_call.1} parent=1 // pred_fallthru
      _
    %p41 = scmp.eq.s32.totalorder 0, 0
    // Predicated region
    $region18: #{tpu_custom_call.1} parent=1 // pred_check
      %p42 = pneg %p41
    $region19: #{tpu_custom_call.1} parent=1 // pred_check_branch
      %44 = sbr.rel (%p42) target = $region21
    $region20: #{tpu_custom_call.1} parent=1 // pred_region
      %vm45 = vcmask 261120
      %46 = vst.msk [vmem:[#allocation2] sm:$0xff] %vm45, 0.0
      %47 = vst.msk [vmem:[#allocation2 + $0x8] sm:$0xff] %vm45, 0.0
    $region21: #{tpu_custom_call.1} parent=1 // pred_fallthru
      _
    %v48 = vld [vmem:[#allocation2] sm:$0xff]
    %v49 = vld [vmem:[#allocation2 + $0x8] sm:$0xff]
    %v50 = vld [vmem:[#allocation3] sm:$0xf]
    %v51 = vld [vmem:[#allocation3 + $0x4] sm:$0xf]
    %v52 = vld [vmem:[#allocation6] sm:$0xf]
    %v53 = vld [vmem:[#allocation6 + $0x4] sm:$0xf]
    %v54 = vld [vmem:[#allocation6 + $0x8] sm:$0xf]
    %v55 = vld [vmem:[#allocation6 + $0xc] sm:$0xf]
    %v58 = vunpack.c.l.b16 %v50
    %v59 = vunpack.c.l.b16 %v51
    %v60 = vpack.c.b16 %v59, %v58
    %v65 = vunpack.c.l.b16 %v52
    %v66 = vunpack.c.l.b16 %v53
    %v67 = vunpack.c.l.b16 %v54
    %v68 = vunpack.c.l.b16 %v55
    %v69 = vpack.c.b16 %v66, %v65
    %v70 = vpack.c.b16 %v68, %v67
    %vm73 = vcmask 261120
    %v75 = vsel %vm73, %v60, 0
    %77 = vmatprep.subr.bf16.mxu0 0
    %78 = vmatpush1.bf16.msra.mxu0 %v69
    %79 = vmatprep.subr.bf16.mxu0 0
    %80 = vmatpush1.bf16.msra.mxu0 %v70
    %81 = vmatprep.subr.bf16.mxu0 0
    %82 = vmatpush1.bf16.msra.mxu0 0
    %83 = vmatprep.subr.bf16.mxu0 0
    %84 = vmatpush1.bf16.msra.mxu0 0
    %85 = vmatprep.subr.bf16.mxu0 0
    %86 = vmatpush1.bf16.msra.mxu0 0
    %87 = vmatprep.subr.bf16.mxu0 0
    %88 = vmatpush1.bf16.msra.mxu0 0
    %89 = vmatprep.subr.bf16.mxu0 0
    %90 = vmatpush1.bf16.msra.mxu0 0
    %91 = vmatprep.subr.bf16.mxu0 0
    %92 = vmatpush1.bf16.msra.mxu0 0
    %93 = vmatprep.subr.bf16.mxu0 0
    %94 = vmatpush1.bf16.msra.mxu0 0
    %95 = vmatprep.subr.bf16.mxu0 0
    %96 = vmatpush1.bf16.msra.mxu0 0
    %97 = vmatprep.subr.bf16.mxu0 0
    %98 = vmatpush1.bf16.msra.mxu0 0
    %99 = vmatprep.subr.bf16.mxu0 0
    %100 = vmatpush1.bf16.msra.mxu0 0
    %101 = vmatprep.subr.bf16.mxu0 0
    %102 = vmatpush1.bf16.msra.mxu0 0
    %103 = vmatprep.subr.bf16.mxu0 0
    %104 = vmatpush1.bf16.msra.mxu0 0
    %105 = vmatprep.subr.bf16.mxu0 0
    %106 = vmatpush1.bf16.msra.mxu0 0
    %107 = vmatprep.subr.bf16.mxu0 0
    %108 = vmatpush1.bf16.msra.mxu0 0
    %109 = vmatprep.mubr.bf16.mxu0 0
    %110 = vmatmul.mubr.bf16.gmra.mrb[0].mxu0 %v75
    %v111 = vpop.f32.mrb[0].mxu0
    %v112 = vadd.f32 0.0, %v111
    %v113 = vpop.f32.mrb[0].mxu0
    %v114 = vpop.f32.mrb[0].mxu0
    %v115 = vadd.f32 0.0, %v114
    %v116 = vpop.f32.mrb[0].mxu0
    %117 = vdwg.mxu0
    %v118 = vadd.f32 %v48, %v112
    %v119 = vadd.f32 %v49, %v115
    %120 = vst.msk [vmem:[#allocation2] sm:$0xff] %vm73, %v118
    %121 = vst.msk [vmem:[#allocation2 + $0x8] sm:$0xff] %vm73, %v119
    // Predicated region
    $region22: #{tpu_custom_call.1} parent=1 // pred_check
      %p122 = pneg %p41
    $region23: #{tpu_custom_call.1} parent=1 // pred_check_branch
      %124 = sbr.rel (%p122) target = $region25
    $region24: #{tpu_custom_call.1} parent=1 // pred_region
      %v125 = vld [vmem:[#allocation2] sm:$0xff]
      %v126 = vld [vmem:[#allocation2 + $0x8] sm:$0xff]
      %127 = vst.msk [vmem:[#allocation8] sm:$0xff] %vm73, %v125
      %128 = vst.msk [vmem:[#allocation8 + $0x8] sm:$0xff] %vm73, %v126
    $region25: #{tpu_custom_call.1} parent=1 // pred_fallthru
      _
    // Predicated region
    $region26: #{tpu_custom_call.1} parent=1 // pred_check
      _
    $region27: #{tpu_custom_call.1} parent=1 // pred_check_branch
      %130 = sbr.rel (0) target = $region29
    $region28: #{tpu_custom_call.1} parent=1 // pred_region
      %s132 = ssub.s32 256, 256
      %133 = vsyncadd [#allocation5], %s132
      %s134 = sshll.u32 [#allocation8], 4
      %s135 = int_to_ptr.vmem [resolvable:$true] %s134
      %140 = dma.vmem_to_hbm [thread:$0]  %s135, 256, %s2, [#allocation5], 128, 128, 8
    $region29: #{tpu_custom_call.1} parent=1 // pred_fallthru
      _
    // Predicated region
    $region30: #{tpu_custom_call.1} parent=1 // pred_check
      _
    $region31: #{tpu_custom_call.1} parent=1 // pred_check_branch
      %142 = sbr.rel (0) target = $region33
    $region32: #{tpu_custom_call.1} parent=1 // pred_region
      %143 = dma.done [#allocation5], 256
    $region33: #{tpu_custom_call.1} parent=1 // pred_fallthru
      _
    %144 = vsyncpa [#allocation4], 1
    %145 = vsyncpa [#allocation7], 1
    %146 = vsyncpa [#allocation5], 1

</llo_original>
